<compile_context>
chip_gen: v5e
topology: v5e:2x2
jax: 0.10.0
libtpu: 0.0.40
codegen_flags: <defaults>
</compile_context>

<pallas_src>
import jax
import jax.numpy as jnp
from jax.experimental import pallas as pl
from jax.experimental.pallas import tpu as pltpu  # noqa: F401  (kept for TPU-specific extensions)

# ---------------------------------------------------------------------------
# Model dimensions (small, consistent with the module's structure)
# ---------------------------------------------------------------------------
B = 2            # batch
C_IN = 4         # input channels
H = W = 16       # spatial
KH = KW = 3      # conv kernel
NUM_FTRS = 32    # backbone feature dim ("hidden_size")
HIDDEN = 64      # projection / prediction hidden dim
PROJ_DIM = 128   # projection_dim (BYOL out_dim)
LANE = 128       # lane width all narrow feature dims are padded to
BN_EPS = 1e-5
CK = C_IN * KH * KW   # 36


# ---------------------------------------------------------------------------
# Fused kernel: conv-as-matmul + ReLU + global average pool + both heads
# ---------------------------------------------------------------------------
def byol_fused_kernel(pat_ref, cw_ref, cb_ref,
                      pw1_ref, pg1_ref, pb1_ref, pw2_ref, pbias2_ref,
                      qw1_ref, qg1_ref, qb1_ref, qw2_ref, qbias2_ref,
                      out_ref):
    hw = H * W
    n_batch = pat_ref.shape[0] // hw   # static

    # ---- backbone: one im2col matmul, bias, ReLU, global average pool ----
    h = jnp.dot(pat_ref[...], cw_ref[...],
                preferred_element_type=jnp.float32)        # [B*H*W, 128]
    h = jnp.maximum(h + cb_ref[...], 0.0)                  # ReLU (bias added once)
    feats = jnp.concatenate(
        [jnp.mean(h[b * hw:(b + 1) * hw, :], axis=0, keepdims=True)
         for b in range(n_batch)],
        axis=0)                                            # [B, 128], stays on-chip

    def bn_relu(t, g_ref, b_ref):
        mu = jnp.mean(t, axis=0, keepdims=True)
        var = jnp.mean((t - mu) ** 2, axis=0, keepdims=True)   # biased var = torch BN training
        return jnp.maximum(
            (t - mu) * jax.lax.rsqrt(var + BN_EPS) * g_ref[...] + b_ref[...], 0.0)

    # ---- projection head: Linear(no bias) -> BN -> ReLU -> Linear(bias) ----
    h1 = jnp.dot(feats, pw1_ref[...], preferred_element_type=jnp.float32)   # [B, 128]
    h1 = bn_relu(h1, pg1_ref, pb1_ref)
    z = jnp.dot(h1, pw2_ref[...], preferred_element_type=jnp.float32) + pbias2_ref[...]

    # ---- prediction head: Linear(no bias) -> BN -> ReLU -> Linear(bias) ----
    h2 = jnp.dot(z, qw1_ref[...], preferred_element_type=jnp.float32)       # [B, 128]
    h2 = bn_relu(h2, qg1_ref, qb1_ref)
    out_ref[...] = jnp.dot(h2, qw2_ref[...],
                           preferred_element_type=jnp.float32) + qbias2_ref[...]   # [B, 128]


# ---------------------------------------------------------------------------
# Forward wrapper: tiny XLA glue (NHWC + pad + im2col) then ONE pallas_call
# ---------------------------------------------------------------------------
@jax.jit
def byol_forward(x, params):
    b = x.shape[0]
    x_nhwc = jnp.transpose(x, (0, 2, 3, 1))                       # [B, H, W, C]
    xp = jnp.pad(x_nhwc, ((0, 0), (1, 1), (1, 1), (0, 0)))        # [B, H+2, W+2, C]
    # patches ordered as col = c*9 + (ki*3 + kj), matching conv_w.reshape(F, C*9)
    pats = jnp.stack([xp[:, i:i + H, j:j + W, :]
                      for i in range(KH) for j in range(KW)], axis=-1)   # [B,H,W,C,9]
    pats = pats.reshape(b * H * W, CK)                            # [B*H*W, 36]

    return pl.pallas_call(
        byol_fused_kernel,
        out_shape=jax.ShapeDtypeStruct((b, PROJ_DIM), jnp.float32),
        # no grid / BlockSpecs: single program, full arrays resident in VMEM
        # (total footprint < 1 MiB on all TPU generations).
    )(pats,
      params["conv_w"], params["conv_b"],
      params["proj_w1"], params["proj_g1"], params["proj_b1"],
      params["proj_w2"], params["proj_bias2"],
      params["pred_w1"], params["pred_g1"], params["pred_b1"],
      params["pred_w2"], params["pred_bias2"])


# ---------------------------------------------------------------------------
# Parameters: raw (PyTorch-shaped) and packed (lane-padded for the kernel)
# ---------------------------------------------------------------------------
def init_raw_params(key):
    ks = jax.random.split(key, 8)
    s = 0.05
    return {
        # synthetic backbone conv stem (stand-in for resnet18 feature extractor)
        "conv_w": s * jax.random.normal(ks[0], (NUM_FTRS, C_IN, KH, KW), jnp.float32),
        "conv_b": s * jax.random.normal(ks[1], (NUM_FTRS,), jnp.float32),
        # projection head
        "proj_w1": s * jax.random.normal(ks[2], (NUM_FTRS, HIDDEN), jnp.float32),
        "proj_g1": jnp.ones((1, HIDDEN), jnp.float32),
        "proj_b1": jnp.zeros((1, HIDDEN), jnp.float32),
        "proj_w2": s * jax.random.normal(ks[3], (HIDDEN, PROJ_DIM), jnp.float32),
        "proj_bias2": s * jax.random.normal(ks[4], (1, PROJ_DIM), jnp.float32),
        # prediction head
        "pred_w1": s * jax.random.normal(ks[5], (PROJ_DIM, HIDDEN), jnp.float32),
        "pred_g1": jnp.ones((1, HIDDEN), jnp.float32),
        "pred_b1": jnp.zeros((1, HIDDEN), jnp.float32),
        "pred_w2": s * jax.random.normal(ks[6], (HIDDEN, PROJ_DIM), jnp.float32),
        "pred_bias2": s * jax.random.normal(ks[7], (1, PROJ_DIM), jnp.float32),
    }


def pack_params(raw):
    """Zero-pad narrow feature dims to LANE=128 so the kernel is lane-dense.

    Padding is numerically exact: padded weight rows/cols, gammas and betas are
    zero, so padded activation columns are exactly 0 through conv/BN/ReLU.
    """
    def pad2(m, rows, cols):
        return jnp.pad(m, ((0, rows - m.shape[0]), (0, cols - m.shape[1])))

    cw = raw["conv_w"].reshape(NUM_FTRS, CK).T            # [C*K*K, NUM_FTRS]
    return {
        "conv_w": pad2(cw, CK, LANE),                                   # [36, 128]
        "conv_b": pad2(raw["conv_b"].reshape(1, NUM_FTRS), 1, LANE),    # [1, 128]
        "proj_w1": pad2(raw["proj_w1"], LANE, LANE),                    # [128, 128]
        "proj_g1": pad2(raw["proj_g1"], 1, LANE),
        "proj_b1": pad2(raw["proj_b1"], 1, LANE),
        "proj_w2": pad2(raw["proj_w2"], LANE, PROJ_DIM),                # [128, 128]
        "proj_bias2": raw["proj_bias2"],                                # [1, 128]
        "pred_w1": pad2(raw["pred_w1"], LANE, LANE),                    # [128, 128]
        "pred_g1": pad2(raw["pred_g1"], 1, LANE),
        "pred_b1": pad2(raw["pred_b1"], 1, LANE),
        "pred_w2": pad2(raw["pred_w2"], LANE, PROJ_DIM),                # [128, 128]
        "pred_bias2": raw["pred_bias2"],                                # [1, 128]
    }


# ---------------------------------------------------------------------------
# Pure-JAX reference (unpadded params) used to sanity-check the fused kernel
# ---------------------------------------------------------------------------
def byol_reference(x, raw):
    hp = jax.lax.Precision.HIGHEST
    f = jax.lax.conv_general_dilated(
        x, raw["conv_w"], window_strides=(1, 1), padding="SAME",
        dimension_numbers=("NCHW", "OIHW", "NCHW"), precision=hp)
    f = jnp.maximum(f + raw["conv_b"][None, :, None, None], 0.0)
    feats = jnp.mean(f, axis=(2, 3))

    def bn_relu(t, g, b_):
        mu = jnp.mean(t, axis=0, keepdims=True)
        var = jnp.mean((t - mu) ** 2, axis=0, keepdims=True)
        return jnp.maximum((t - mu) * jax.lax.rsqrt(var + BN_EPS) * g + b_, 0.0)

    h1 = bn_relu(jnp.dot(feats, raw["proj_w1"], precision=hp),
                 raw["proj_g1"], raw["proj_b1"])
    z = jnp.dot(h1, raw["proj_w2"], precision=hp) + raw["proj_bias2"]
    h2 = bn_relu(jnp.dot(z, raw["pred_w1"], precision=hp),
                 raw["pred_g1"], raw["pred_b1"])
    return jnp.dot(h2, raw["pred_w2"], precision=hp) + raw["pred_bias2"]


if __name__ == "__main__":
    key = jax.random.PRNGKey(0)
    kx, kp = jax.random.split(key)
    x = jax.random.normal(kx, (B, C_IN, H, W), jnp.float32)   # NCHW, like PyTorch
    raw = init_raw_params(kp)
    params = pack_params(raw)

    # TODO(synk): lightly BYOL also keeps an EMA "momentum" target network used
    # only by the loss; this kernel implements the online branch model(x)
    # (backbone -> projection -> prediction), i.e. forward() in training mode.
    out = jax.block_until_ready(byol_forward(x, params))
    assert out.shape == (B, PROJ_DIM) and out.dtype == jnp.float32
    assert bool(jnp.all(jnp.isfinite(out)))

    ref = jax.block_until_ready(byol_reference(x, raw))
    assert jnp.allclose(out, ref, atol=5e-2, rtol=5e-2), float(jnp.max(jnp.abs(out - ref)))
    print("KERNEL_OK")
</pallas_src>

<mosaic_0001>
module attributes {stable_mosaic.version = 11 : i64} {
  func.func @byol_fused_kernel(%arg0: memref<512x36xf32, #tpu.memory_space<vmem>>, %arg1: memref<36x128xf32, #tpu.memory_space<vmem>>, %arg2: memref<1x128xf32, #tpu.memory_space<vmem>>, %arg3: memref<128x128xf32, #tpu.memory_space<vmem>>, %arg4: memref<1x128xf32, #tpu.memory_space<vmem>>, %arg5: memref<1x128xf32, #tpu.memory_space<vmem>>, %arg6: memref<128x128xf32, #tpu.memory_space<vmem>>, %arg7: memref<1x128xf32, #tpu.memory_space<vmem>>, %arg8: memref<128x128xf32, #tpu.memory_space<vmem>>, %arg9: memref<1x128xf32, #tpu.memory_space<vmem>>, %arg10: memref<1x128xf32, #tpu.memory_space<vmem>>, %arg11: memref<128x128xf32, #tpu.memory_space<vmem>>, %arg12: memref<1x128xf32, #tpu.memory_space<vmem>>, %arg13: memref<2x128xf32, #tpu.memory_space<vmem>>) attributes {dimension_semantics = [], scalar_prefetch = 0 : i64, scratch_operands = 0 : i64, tpu.core_type = #tpu.core_type<tc>} {
    %c0 = arith.constant 0 : index
    %c0_0 = arith.constant 0 : index
    %0 = vector.load %arg0[%c0, %c0_0] : memref<512x36xf32, #tpu.memory_space<vmem>>, vector<512x36xf32>
    %c0_1 = arith.constant 0 : index
    %c0_2 = arith.constant 0 : index
    %1 = vector.load %arg1[%c0_1, %c0_2] : memref<36x128xf32, #tpu.memory_space<vmem>>, vector<36x128xf32>
    %cst = arith.constant dense<0.000000e+00> : vector<512x128xf32>
    %2 = tpu.matmul %0, %1, %cst {dimension_numbers = #tpu.dot_dimension_numbers<[1], [0], [0], [1], [0, 0, 1, 1], [], []>} : vector<512x36xf32>, vector<36x128xf32>, vector<512x128xf32> -> vector<512x128xf32>
    %c0_3 = arith.constant 0 : index
    %c0_4 = arith.constant 0 : index
    %3 = vector.load %arg2[%c0_3, %c0_4] : memref<1x128xf32, #tpu.memory_space<vmem>>, vector<1x128xf32>
    %4 = vector.broadcast %3 : vector<1x128xf32> to vector<512x128xf32>
    %5 = arith.addf %2, %4 : vector<512x128xf32>
    %cst_5 = arith.constant 0.000000e+00 : f32
    %6 = vector.broadcast %cst_5 : f32 to vector<512x128xf32>
    %7 = arith.maximumf %5, %6 : vector<512x128xf32>
    %8 = vector.extract_strided_slice %7 {offsets = [0, 0], sizes = [256, 128], strides = [1, 1]} : vector<512x128xf32> to vector<256x128xf32>
    %cst_6 = arith.constant dense<0.000000e+00> : vector<128xf32>
    %9 = vector.multi_reduction <add>, %8, %cst_6 [0] : vector<256x128xf32> to vector<128xf32>
    %10 = vector.shape_cast %9 : vector<128xf32> to vector<1x128xf32>
    %cst_7 = arith.constant 2.560000e+02 : f32
    %11 = vector.broadcast %cst_7 : f32 to vector<1x128xf32>
    %12 = arith.divf %10, %11 : vector<1x128xf32>
    %13 = vector.extract_strided_slice %7 {offsets = [256, 0], sizes = [256, 128], strides = [1, 1]} : vector<512x128xf32> to vector<256x128xf32>
    %cst_8 = arith.constant dense<0.000000e+00> : vector<128xf32>
    %14 = vector.multi_reduction <add>, %13, %cst_8 [0] : vector<256x128xf32> to vector<128xf32>
    %15 = vector.shape_cast %14 : vector<128xf32> to vector<1x128xf32>
    %cst_9 = arith.constant 2.560000e+02 : f32
    %16 = vector.broadcast %cst_9 : f32 to vector<1x128xf32>
    %17 = arith.divf %15, %16 : vector<1x128xf32>
    %18 = tpu.concatenate %12, %17 in 0 : vector<1x128xf32>, vector<1x128xf32> -> vector<2x128xf32>
    %c0_10 = arith.constant 0 : index
    %c0_11 = arith.constant 0 : index
    %19 = vector.load %arg3[%c0_10, %c0_11] : memref<128x128xf32, #tpu.memory_space<vmem>>, vector<128x128xf32>
    %cst_12 = arith.constant dense<0.000000e+00> : vector<2x128xf32>
    %20 = tpu.matmul %18, %19, %cst_12 {dimension_numbers = #tpu.dot_dimension_numbers<[1], [0], [0], [1], [0, 0, 1, 1], [], []>} : vector<2x128xf32>, vector<128x128xf32>, vector<2x128xf32> -> vector<2x128xf32>
    %cst_13 = arith.constant dense<0.000000e+00> : vector<128xf32>
    %21 = vector.multi_reduction <add>, %20, %cst_13 [0] : vector<2x128xf32> to vector<128xf32>
    %22 = vector.shape_cast %21 : vector<128xf32> to vector<1x128xf32>
    %cst_14 = arith.constant 2.000000e+00 : f32
    %23 = vector.broadcast %cst_14 : f32 to vector<1x128xf32>
    %24 = arith.divf %22, %23 : vector<1x128xf32>
    %25 = vector.broadcast %24 : vector<1x128xf32> to vector<2x128xf32>
    %26 = arith.subf %20, %25 : vector<2x128xf32>
    %27 = arith.mulf %26, %26 : vector<2x128xf32>
    %cst_15 = arith.constant dense<0.000000e+00> : vector<128xf32>
    %28 = vector.multi_reduction <add>, %27, %cst_15 [0] : vector<2x128xf32> to vector<128xf32>
    %29 = vector.shape_cast %28 : vector<128xf32> to vector<1x128xf32>
    %cst_16 = arith.constant 2.000000e+00 : f32
    %30 = vector.broadcast %cst_16 : f32 to vector<1x128xf32>
    %31 = arith.divf %29, %30 : vector<1x128xf32>
    %32 = vector.broadcast %24 : vector<1x128xf32> to vector<2x128xf32>
    %33 = arith.subf %20, %32 : vector<2x128xf32>
    %cst_17 = arith.constant 9.99999974E-6 : f32
    %34 = vector.broadcast %cst_17 : f32 to vector<1x128xf32>
    %35 = arith.addf %31, %34 : vector<1x128xf32>
    %36 = math.rsqrt %35 : vector<1x128xf32>
    %37 = vector.broadcast %36 : vector<1x128xf32> to vector<2x128xf32>
    %38 = arith.mulf %33, %37 : vector<2x128xf32>
    %c0_18 = arith.constant 0 : index
    %c0_19 = arith.constant 0 : index
    %39 = vector.load %arg4[%c0_18, %c0_19] : memref<1x128xf32, #tpu.memory_space<vmem>>, vector<1x128xf32>
    %40 = vector.broadcast %39 : vector<1x128xf32> to vector<2x128xf32>
    %41 = arith.mulf %38, %40 : vector<2x128xf32>
    %c0_20 = arith.constant 0 : index
    %c0_21 = arith.constant 0 : index
    %42 = vector.load %arg5[%c0_20, %c0_21] : memref<1x128xf32, #tpu.memory_space<vmem>>, vector<1x128xf32>
    %43 = vector.broadcast %42 : vector<1x128xf32> to vector<2x128xf32>
    %44 = arith.addf %41, %43 : vector<2x128xf32>
    %cst_22 = arith.constant 0.000000e+00 : f32
    %45 = vector.broadcast %cst_22 : f32 to vector<2x128xf32>
    %46 = arith.maximumf %44, %45 : vector<2x128xf32>
    %c0_23 = arith.constant 0 : index
    %c0_24 = arith.constant 0 : index
    %47 = vector.load %arg6[%c0_23, %c0_24] : memref<128x128xf32, #tpu.memory_space<vmem>>, vector<128x128xf32>
    %cst_25 = arith.constant dense<0.000000e+00> : vector<2x128xf32>
    %48 = tpu.matmul %46, %47, %cst_25 {dimension_numbers = #tpu.dot_dimension_numbers<[1], [0], [0], [1], [0, 0, 1, 1], [], []>} : vector<2x128xf32>, vector<128x128xf32>, vector<2x128xf32> -> vector<2x128xf32>
    %c0_26 = arith.constant 0 : index
    %c0_27 = arith.constant 0 : index
    %49 = vector.load %arg7[%c0_26, %c0_27] : memref<1x128xf32, #tpu.memory_space<vmem>>, vector<1x128xf32>
    %50 = vector.broadcast %49 : vector<1x128xf32> to vector<2x128xf32>
    %51 = arith.addf %48, %50 : vector<2x128xf32>
    %c0_28 = arith.constant 0 : index
    %c0_29 = arith.constant 0 : index
    %52 = vector.load %arg8[%c0_28, %c0_29] : memref<128x128xf32, #tpu.memory_space<vmem>>, vector<128x128xf32>
    %cst_30 = arith.constant dense<0.000000e+00> : vector<2x128xf32>
    %53 = tpu.matmul %51, %52, %cst_30 {dimension_numbers = #tpu.dot_dimension_numbers<[1], [0], [0], [1], [0, 0, 1, 1], [], []>} : vector<2x128xf32>, vector<128x128xf32>, vector<2x128xf32> -> vector<2x128xf32>
    %cst_31 = arith.constant dense<0.000000e+00> : vector<128xf32>
    %54 = vector.multi_reduction <add>, %53, %cst_31 [0] : vector<2x128xf32> to vector<128xf32>
    %55 = vector.shape_cast %54 : vector<128xf32> to vector<1x128xf32>
    %cst_32 = arith.constant 2.000000e+00 : f32
    %56 = vector.broadcast %cst_32 : f32 to vector<1x128xf32>
    %57 = arith.divf %55, %56 : vector<1x128xf32>
    %58 = vector.broadcast %57 : vector<1x128xf32> to vector<2x128xf32>
    %59 = arith.subf %53, %58 : vector<2x128xf32>
    %60 = arith.mulf %59, %59 : vector<2x128xf32>
    %cst_33 = arith.constant dense<0.000000e+00> : vector<128xf32>
    %61 = vector.multi_reduction <add>, %60, %cst_33 [0] : vector<2x128xf32> to vector<128xf32>
    %62 = vector.shape_cast %61 : vector<128xf32> to vector<1x128xf32>
    %cst_34 = arith.constant 2.000000e+00 : f32
    %63 = vector.broadcast %cst_34 : f32 to vector<1x128xf32>
    %64 = arith.divf %62, %63 : vector<1x128xf32>
    %65 = vector.broadcast %57 : vector<1x128xf32> to vector<2x128xf32>
    %66 = arith.subf %53, %65 : vector<2x128xf32>
    %cst_35 = arith.constant 9.99999974E-6 : f32
    %67 = vector.broadcast %cst_35 : f32 to vector<1x128xf32>
    %68 = arith.addf %64, %67 : vector<1x128xf32>
    %69 = math.rsqrt %68 : vector<1x128xf32>
    %70 = vector.broadcast %69 : vector<1x128xf32> to vector<2x128xf32>
    %71 = arith.mulf %66, %70 : vector<2x128xf32>
    %c0_36 = arith.constant 0 : index
    %c0_37 = arith.constant 0 : index
    %72 = vector.load %arg9[%c0_36, %c0_37] : memref<1x128xf32, #tpu.memory_space<vmem>>, vector<1x128xf32>
    %73 = vector.broadcast %72 : vector<1x128xf32> to vector<2x128xf32>
    %74 = arith.mulf %71, %73 : vector<2x128xf32>
    %c0_38 = arith.constant 0 : index
    %c0_39 = arith.constant 0 : index
    %75 = vector.load %arg10[%c0_38, %c0_39] : memref<1x128xf32, #tpu.memory_space<vmem>>, vector<1x128xf32>
    %76 = vector.broadcast %75 : vector<1x128xf32> to vector<2x128xf32>
    %77 = arith.addf %74, %76 : vector<2x128xf32>
    %cst_40 = arith.constant 0.000000e+00 : f32
    %78 = vector.broadcast %cst_40 : f32 to vector<2x128xf32>
    %79 = arith.maximumf %77, %78 : vector<2x128xf32>
    %c0_41 = arith.constant 0 : index
    %c0_42 = arith.constant 0 : index
    %80 = vector.load %arg11[%c0_41, %c0_42] : memref<128x128xf32, #tpu.memory_space<vmem>>, vector<128x128xf32>
    %cst_43 = arith.constant dense<0.000000e+00> : vector<2x128xf32>
    %81 = tpu.matmul %79, %80, %cst_43 {dimension_numbers = #tpu.dot_dimension_numbers<[1], [0], [0], [1], [0, 0, 1, 1], [], []>} : vector<2x128xf32>, vector<128x128xf32>, vector<2x128xf32> -> vector<2x128xf32>
    %c0_44 = arith.constant 0 : index
    %c0_45 = arith.constant 0 : index
    %82 = vector.load %arg12[%c0_44, %c0_45] : memref<1x128xf32, #tpu.memory_space<vmem>>, vector<1x128xf32>
    %83 = vector.broadcast %82 : vector<1x128xf32> to vector<2x128xf32>
    %84 = arith.addf %81, %83 : vector<2x128xf32>
    %c0_46 = arith.constant 0 : index
    %c0_47 = arith.constant 0 : index
    %85 = vector.load %arg13[%c0_46, %c0_47] : memref<2x128xf32, #tpu.memory_space<vmem>>, vector<2x128xf32>
    tpu.vector_store %arg13[%c0_46, %c0_47], %84 {strides = array<i32>} : memref<2x128xf32, #tpu.memory_space<vmem>>, vector<2x128xf32>,
    return
  }
}

</mosaic_0001>

<llo_original>
// kernel: byol_forward.1
$region0: #{byol_forward.1}
  #allocation0 [shape = 'u32[]', space=smem, size = 0x4, offset = 0x4, fixed_abs, tag = 'smem constant byte address 0x4 - core index']
  #allocation1 [shape = 'u32[72,128]{1,0:T(1,128)}', space=vmem, size = 0x9000, scoped, tag = 'internal scratch']
  %s0 = inlined_call_operand.vmem [shape: f32[512,36], index: 0, kind: input, shape index: {}]
  %s1 = inlined_call_operand.vmem [shape: f32[36,128], index: 1, kind: input, shape index: {}]
  %s2 = inlined_call_operand.vmem [shape: f32[1,128], index: 2, kind: input, shape index: {}]
  %s3 = inlined_call_operand.vmem [shape: f32[128,128], index: 3, kind: input, shape index: {}]
  %s4 = inlined_call_operand.vmem [shape: f32[1,128], index: 4, kind: input, shape index: {}]
  %s5 = inlined_call_operand.vmem [shape: f32[1,128], index: 5, kind: input, shape index: {}]
  %s6 = inlined_call_operand.vmem [shape: f32[128,128], index: 6, kind: input, shape index: {}]
  %s7 = inlined_call_operand.vmem [shape: f32[1,128], index: 7, kind: input, shape index: {}]
  %s8 = inlined_call_operand.vmem [shape: f32[128,128], index: 8, kind: input, shape index: {}]
  %s9 = inlined_call_operand.vmem [shape: f32[1,128], index: 9, kind: input, shape index: {}]
  %s10 = inlined_call_operand.vmem [shape: f32[1,128], index: 10, kind: input, shape index: {}]
  %s11 = inlined_call_operand.vmem [shape: f32[128,128], index: 11, kind: input, shape index: {}]
  %s12 = inlined_call_operand.vmem [shape: f32[1,128], index: 12, kind: input, shape index: {}]
  %s13 = inlined_call_operand.hbm [shape: f32[2,128], index: 13, kind: output, shape index: {}]
  %s14 = sld [smem:[#allocation0]]
  $region62: #{byol_forward.1} parent=0
    _
  %s16 = ssub.s32 1, %s14
  %s17 = scalar_select 0, %s16, %s14
  $region1: #{byol_forward.1} parent=0
    #allocation2 [shape = 'u8[1024]{0}', space=vmem, size = 0x400, scoped, tag = 'output window, operand 0, single buffered']
    #allocation3 [shape = 's32[1]{0}', space=sflag, size = 0x4, scoped, tag = 'scoped memory for byol_forward.1']
    %18 = vsyncpa [#allocation3], 0
    // Predicated region
    $region2: #{byol_forward.1} parent=1 // pred_check
      _
    $region3: #{byol_forward.1} parent=1 // pred_check_branch
      %20 = sbr.rel (0) target = $region5
    $region4: #{byol_forward.1} parent=1 // pred_region
      _
    $region5: #{byol_forward.1} parent=1 // pred_fallthru
      _
    // Predicated region
    $region6: #{byol_forward.1} parent=1 // pred_check
      _
    $region7: #{byol_forward.1} parent=1 // pred_check_branch
      %22 = sbr.rel (0) target = $region9
    $region8: #{byol_forward.1} parent=1 // pred_region
      _
    $region9: #{byol_forward.1} parent=1 // pred_fallthru
      _
    // Predicated region
    $region10: #{byol_forward.1} parent=1 // pred_check
      _
    $region11: #{byol_forward.1} parent=1 // pred_check_branch
      %24 = sbr.rel (0) target = $region13
    $region12: #{byol_forward.1} parent=1 // pred_region
      _
    $region13: #{byol_forward.1} parent=1 // pred_fallthru
      _
    // Predicated region
    $region14: #{byol_forward.1} parent=1 // pred_check
      _
    $region15: #{byol_forward.1} parent=1 // pred_check_branch
      %26 = sbr.rel (0) target = $region17
    $region16: #{byol_forward.1} parent=1 // pred_region
      _
    $region17: #{byol_forward.1} parent=1 // pred_fallthru
      _
    // Predicated region
    $region18: #{byol_forward.1} parent=1 // pred_check
      _
    $region19: #{byol_forward.1} parent=1 // pred_check_branch
      %28 = sbr.rel (0) target = $region21
    $region20: #{byol_forward.1} parent=1 // pred_region
      _
    $region21: #{byol_forward.1} parent=1 // pred_fallthru
      _
    // Predicated region
    $region22: #{byol_forward.1} parent=1 // pred_check
      _
    $region23: #{byol_forward.1} parent=1 // pred_check_branch
      %30 = sbr.rel (0) target = $region25
    $region24: #{byol_forward.1} parent=1 // pred_region
      _
    $region25: #{byol_forward.1} parent=1 // pred_fallthru
      _
    // Predicated region
    $region26: #{byol_forward.1} parent=1 // pred_check
      _
    $region27: #{byol_forward.1} parent=1 // pred_check_branch
      %32 = sbr.rel (0) target = $region29
    $region28: #{byol_forward.1} parent=1 // pred_region
      _
    $region29: #{byol_forward.1} parent=1 // pred_fallthru
      _
    // Predicated region
    $region30: #{byol_forward.1} parent=1 // pred_check
      _
    $region31: #{byol_forward.1} parent=1 // pred_check_branch
      %34 = sbr.rel (0) target = $region33
    $region32: #{byol_forward.1} parent=1 // pred_region
      _
    $region33: #{byol_forward.1} parent=1 // pred_fallthru
      _
    // Predicated region
    $region34: #{byol_forward.1} parent=1 // pred_check
      _
    $region35: #{byol_forward.1} parent=1 // pred_check_branch
      %36 = sbr.rel (0) target = $region37
    $region36: #{byol_forward.1} parent=1 // pred_region
      _
    $region37: #{byol_forward.1} parent=1 // pred_fallthru
      _
    // Predicated region
    $region38: #{byol_forward.1} parent=1 // pred_check
      _
    $region39: #{byol_forward.1} parent=1 // pred_check_branch
      %38 = sbr.rel (0) target = $region41
    $region40: #{byol_forward.1} parent=1 // pred_region
      _
    $region41: #{byol_forward.1} parent=1 // pred_fallthru
      _
    // Predicated region
    $region42: #{byol_forward.1} parent=1 // pred_check
      _
    $region43: #{byol_forward.1} parent=1 // pred_check_branch
      %40 = sbr.rel (0) target = $region45
    $region44: #{byol_forward.1} parent=1 // pred_region
      _
    $region45: #{byol_forward.1} parent=1 // pred_fallthru
      _
    // Predicated region
    $region46: #{byol_forward.1} parent=1 // pred_check
      _
    $region47: #{byol_forward.1} parent=1 // pred_check_branch
      %42 = sbr.rel (0) target = $region49
    $region48: #{byol_forward.1} parent=1 // pred_region
      _
    $region49: #{byol_forward.1} parent=1 // pred_fallthru
      _
    // Predicated region
    $region50: #{byol_forward.1} parent=1 // pred_check
      _
    $region51: #{byol_forward.1} parent=1 // pred_check_branch
      %44 = sbr.rel (0) target = $region53
    $region52: #{byol_forward.1} parent=1 // pred_region
      _
    $region53: #{byol_forward.1} parent=1 // pred_fallthru
      _
    %v45 = vld [vmem:[%s0] sm:$0xff]
    %v46 = vld [vmem:[%s0 + $0x8] sm:$0xff]
    %v47 = vld [vmem:[%s0 + $0x10] sm:$0xff]
    %v48 = vld [vmem:[%s0 + $0x18] sm:$0xff]
    %v49 = vld [vmem:[%s0 + $0x20] sm:$0xff]
    %v50 = vld [vmem:[%s0 + $0x28] sm:$0xff]
    %v51 = vld [vmem:[%s0 + $0x30] sm:$0xff]
    %v52 = vld [vmem:[%s0 + $0x38] sm:$0xff]
    %v53 = vld [vmem:[%s0 + $0x40] sm:$0xff]
    %v54 = vld [vmem:[%s0 + $0x48] sm:$0xff]
    %v55 = vld [vmem:[%s0 + $0x50] sm:$0xff]
    %v56 = vld [vmem:[%s0 + $0x58] sm:$0xff]
    %v57 = vld [vmem:[%s0 + $0x60] sm:$0xff]
    %v58 = vld [vmem:[%s0 + $0x68] sm:$0xff]
    %v59 = vld [vmem:[%s0 + $0x70] sm:$0xff]
    %v60 = vld [vmem:[%s0 + $0x78] sm:$0xff]
    %v61 = vld [vmem:[%s0 + $0x80] sm:$0xff]
    %v62 = vld [vmem:[%s0 + $0x88] sm:$0xff]
    %v63 = vld [vmem:[%s0 + $0x90] sm:$0xff]
    %v64 = vld [vmem:[%s0 + $0x98] sm:$0xff]
    %v65 = vld [vmem:[%s0 + $0xa0] sm:$0xff]
    %v66 = vld [vmem:[%s0 + $0xa8] sm:$0xff]
    %v67 = vld [vmem:[%s0 + $0xb0] sm:$0xff]
    %v68 = vld [vmem:[%s0 + $0xb8] sm:$0xff]
    %v69 = vld [vmem:[%s0 + $0xc0] sm:$0xff]
    %v70 = vld [vmem:[%s0 + $0xc8] sm:$0xff]
    %v71 = vld [vmem:[%s0 + $0xd0] sm:$0xff]
    %v72 = vld [vmem:[%s0 + $0xd8] sm:$0xff]
    %v73 = vld [vmem:[%s0 + $0xe0] sm:$0xff]
    %v74 = vld [vmem:[%s0 + $0xe8] sm:$0xff]
    %v75 = vld [vmem:[%s0 + $0xf0] sm:$0xff]
    %v76 = vld [vmem:[%s0 + $0xf8] sm:$0xff]
    %v77 = vld [vmem:[%s0 + $0x100] sm:$0xff]
    %v78 = vld [vmem:[%s0 + $0x108] sm:$0xff]
    %v79 = vld [vmem:[%s0 + $0x110] sm:$0xff]
    %v80 = vld [vmem:[%s0 + $0x118] sm:$0xff]
    %v81 = vld [vmem:[%s0 + $0x120] sm:$0xff]
    %v82 = vld [vmem:[%s0 + $0x128] sm:$0xff]
    %v83 = vld [vmem:[%s0 + $0x130] sm:$0xff]
    %v84 = vld [vmem:[%s0 + $0x138] sm:$0xff]
    %v85 = vld [vmem:[%s0 + $0x140] sm:$0xff]
    %v86 = vld [vmem:[%s0 + $0x148] sm:$0xff]
    %v87 = vld [vmem:[%s0 + $0x150] sm:$0xff]
    %v88 = vld [vmem:[%s0 + $0x158] sm:$0xff]
    %v89 = vld [vmem:[%s0 + $0x160] sm:$0xff]
    %v90 = vld [vmem:[%s0 + $0x168] sm:$0xff]
    %v91 = vld [vmem:[%s0 + $0x170] sm:$0xff]
    %v92 = vld [vmem:[%s0 + $0x178] sm:$0xff]
    %v93 = vld [vmem:[%s0 + $0x180] sm:$0xff]
    %v94 = vld [vmem:[%s0 + $0x188] sm:$0xff]
    %v95 = vld [vmem:[%s0 + $0x190] sm:$0xff]
    %v96 = vld [vmem:[%s0 + $0x198] sm:$0xff]
    %v97 = vld [vmem:[%s0 + $0x1a0] sm:$0xff]
    %v98 = vld [vmem:[%s0 + $0x1a8] sm:$0xff]
    %v99 = vld [vmem:[%s0 + $0x1b0] sm:$0xff]
    %v100 = vld [vmem:[%s0 + $0x1b8] sm:$0xff]
    %v101 = vld [vmem:[%s0 + $0x1c0] sm:$0xff]
    %v102 = vld [vmem:[%s0 + $0x1c8] sm:$0xff]
    %v103 = vld [vmem:[%s0 + $0x1d0] sm:$0xff]
    %v104 = vld [vmem:[%s0 + $0x1d8] sm:$0xff]
    %v105 = vld [vmem:[%s0 + $0x1e0] sm:$0xff]
    %v106 = vld [vmem:[%s0 + $0x1e8] sm:$0xff]
    %v107 = vld [vmem:[%s0 + $0x1f0] sm:$0xff]
    %v108 = vld [vmem:[%s0 + $0x1f8] sm:$0xff]
    %v109 = vld [vmem:[%s1] sm:$0xff]
    %v110 = vld [vmem:[%s1 + $0x8] sm:$0xff]
    %v111 = vld [vmem:[%s1 + $0x10] sm:$0xff]
    %v112 = vld [vmem:[%s1 + $0x18] sm:$0xff]
    %v113 = vld [vmem:[%s1 + $0x20] sm:$0xf]
    %v114 = vld [vmem:[%s2] sm:$0x1]
    %v116 = vperm.slane %v114, 0
    %vm118 = vcmask 293888
    %v120 = vsel %vm118, %v45, 0
    %v123 = vsel %vm118, %v46, 0
    %v126 = vsel %vm118, %v47, 0
    %v129 = vsel %vm118, %v48, 0
    %v132 = vsel %vm118, %v49, 0
    %v135 = vsel %vm118, %v50, 0
    %v138 = vsel %vm118, %v51, 0
    %v141 = vsel %vm118, %v52, 0
    %v144 = vsel %vm118, %v53, 0
    %v147 = vsel %vm118, %v54, 0
    %v150 = vsel %vm118, %v55, 0
    %v153 = vsel %vm118, %v56, 0
    %v156 = vsel %vm118, %v57, 0
    %v159 = vsel %vm118, %v58, 0
    %v162 = vsel %vm118, %v59, 0
    %v165 = vsel %vm118, %v60, 0
    %v168 = vsel %vm118, %v61, 0
    %v171 = vsel %vm118, %v62, 0
    %v174 = vsel %vm118, %v63, 0
    %v177 = vsel %vm118, %v64, 0
    %v180 = vsel %vm118, %v65, 0
    %v183 = vsel %vm118, %v66, 0
    %v186 = vsel %vm118, %v67, 0
    %v189 = vsel %vm118, %v68, 0
    %v192 = vsel %vm118, %v69, 0
    %v195 = vsel %vm118, %v70, 0
    %v198 = vsel %vm118, %v71, 0
    %v201 = vsel %vm118, %v72, 0
    %v204 = vsel %vm118, %v73, 0
    %v207 = vsel %vm118, %v74, 0
    %v210 = vsel %vm118, %v75, 0
    %v213 = vsel %vm118, %v76, 0
    %v216 = vsel %vm118, %v77, 0
    %v219 = vsel %vm118, %v78, 0
    %v222 = vsel %vm118, %v79, 0
    %v225 = vsel %vm118, %v80, 0
    %v228 = vsel %vm118, %v81, 0
    %v231 = vsel %vm118, %v82, 0
    %v234 = vsel %vm118, %v83, 0
    %v237 = vsel %vm118, %v84, 0
    %v240 = vsel %vm118, %v85, 0
    %v243 = vsel %vm118, %v86, 0
    %v246 = vsel %vm118, %v87, 0
    %v249 = vsel %vm118, %v88, 0
    %v252 = vsel %vm118, %v89, 0
    %v255 = vsel %vm118, %v90, 0
    %v258 = vsel %vm118, %v91, 0
    %v261 = vsel %vm118, %v92, 0
    %v264 = vsel %vm118, %v93, 0
    %v267 = vsel %vm118, %v94, 0
    %v270 = vsel %vm118, %v95, 0
    %v273 = vsel %vm118, %v96, 0
    %v276 = vsel %vm118, %v97, 0
    %v279 = vsel %vm118, %v98, 0
    %v282 = vsel %vm118, %v99, 0
    %v285 = vsel %vm118, %v100, 0
    %v288 = vsel %vm118, %v101, 0
    %v291 = vsel %vm118, %v102, 0
    %v294 = vsel %vm118, %v103, 0
    %v297 = vsel %vm118, %v104, 0
    %v300 = vsel %vm118, %v105, 0
    %v303 = vsel %vm118, %v106, 0
    %v306 = vsel %vm118, %v107, 0
    %v309 = vsel %vm118, %v108, 0
    %vm311 = vcmask 1043456
    %v313 = vsel %vm311, %v113, 0
    %315 = vmatpush.msra.mxu0 0.0
    %316 = vmatpush.msra.mxu0 0.0
    %317 = vmatpush.msra.mxu0 0.0
    %318 = vmatpush.msra.mxu0 0.0
    %319 = vmatpush.msra.mxu0 0.0
    %320 = vmatpush.msra.mxu0 0.0
    %321 = vmatpush.msra.mxu0 0.0
    %322 = vmatpush.msra.mxu0 0.0
    %323 = vmatpush.msra.mxu0 0.0
    %324 = vmatpush.msra.mxu0 0.0
    %325 = vmatpush.msra.mxu0 0.0
    %326 = vmatpush.msra.mxu0 %v313
    %327 = vmatpush.msra.mxu0 %v112
    %328 = vmatpush.msra.mxu0 %v111
    %329 = vmatpush.msra.mxu0 %v110
    %330 = vmatpush.msra.mxu0 %v109
    %331 = vmatmul.f32.gmra.mxu0 %v120
    %v332 = vpop.f32.mrf.mxu0
    %v333 = vadd.f32 %v116, %v332
    %334 = vmatmul.f32.gmra.mxu0 %v123
    %v335 = vpop.f32.mrf.mxu0
    %v336 = vadd.f32 %v116, %v335
    %337 = vmatmul.f32.gmra.mxu0 %v126
    %v338 = vpop.f32.mrf.mxu0
    %v339 = vadd.f32 %v116, %v338
    %340 = vmatmul.f32.gmra.mxu0 %v129
    %v341 = vpop.f32.mrf.mxu0
    %v342 = vadd.f32 %v116, %v341
    %343 = vmatmul.f32.gmra.mxu0 %v132
    %v344 = vpop.f32.mrf.mxu0
    %v345 = vadd.f32 %v116, %v344
    %346 = vmatmul.f32.gmra.mxu0 %v135
    %v347 = vpop.f32.mrf.mxu0
    %v348 = vadd.f32 %v116, %v347
    %349 = vmatmul.f32.gmra.mxu0 %v138
    %v350 = vpop.f32.mrf.mxu0
    %v351 = vadd.f32 %v116, %v350
    %352 = vmatmul.f32.gmra.mxu0 %v141
    %v353 = vpop.f32.mrf.mxu0
    %v354 = vadd.f32 %v116, %v353
    %355 = vmatmul.f32.gmra.mxu0 %v144
    %v356 = vpop.f32.mrf.mxu0
    %v357 = vadd.f32 %v116, %v356
    %358 = vmatmul.f32.gmra.mxu0 %v147
    %v359 = vpop.f32.mrf.mxu0
    %v360 = vadd.f32 %v116, %v359
    %361 = vmatmul.f32.gmra.mxu0 %v150
    %v362 = vpop.f32.mrf.mxu0
    %v363 = vadd.f32 %v116, %v362
    %364 = vmatmul.f32.gmra.mxu0 %v153
    %v365 = vpop.f32.mrf.mxu0
    %v366 = vadd.f32 %v116, %v365
    %367 = vmatmul.f32.gmra.mxu0 %v156
    %v368 = vpop.f32.mrf.mxu0
    %v369 = vadd.f32 %v116, %v368
    %370 = vmatmul.f32.gmra.mxu0 %v159
    %v371 = vpop.f32.mrf.mxu0
    %v372 = vadd.f32 %v116, %v371
    %373 = vmatmul.f32.gmra.mxu0 %v162
    %v374 = vpop.f32.mrf.mxu0
    %v375 = vadd.f32 %v116, %v374
    %376 = vmatmul.f32.gmra.mxu0 %v165
    %v377 = vpop.f32.mrf.mxu0
    %v378 = vadd.f32 %v116, %v377
    %379 = vmatmul.f32.gmra.mxu0 %v168
    %v380 = vpop.f32.mrf.mxu0
    %v381 = vadd.f32 %v116, %v380
    %382 = vmatmul.f32.gmra.mxu0 %v171
    %v383 = vpop.f32.mrf.mxu0
    %v384 = vadd.f32 %v116, %v383
    %385 = vmatmul.f32.gmra.mxu0 %v174
    %v386 = vpop.f32.mrf.mxu0
    %v387 = vadd.f32 %v116, %v386
    %388 = vmatmul.f32.gmra.mxu0 %v177
    %v389 = vpop.f32.mrf.mxu0
    %v390 = vadd.f32 %v116, %v389
    %391 = vmatmul.f32.gmra.mxu0 %v180
    %v392 = vpop.f32.mrf.mxu0
    %v393 = vadd.f32 %v116, %v392
    %394 = vmatmul.f32.gmra.mxu0 %v183
    %v395 = vpop.f32.mrf.mxu0
    %v396 = vadd.f32 %v116, %v395
    %397 = vmatmul.f32.gmra.mxu0 %v186
    %v398 = vpop.f32.mrf.mxu0
    %v399 = vadd.f32 %v116, %v398
    %400 = vmatmul.f32.gmra.mxu0 %v189
    %v401 = vpop.f32.mrf.mxu0
    %v402 = vadd.f32 %v116, %v401
    %403 = vmatmul.f32.gmra.mxu0 %v192
    %v404 = vpop.f32.mrf.mxu0
    %v405 = vadd.f32 %v116, %v404
    %406 = vmatmul.f32.gmra.mxu0 %v195
    %v407 = vpop.f32.mrf.mxu0
    %v408 = vadd.f32 %v116, %v407
    %409 = vmatmul.f32.gmra.mxu0 %v198
    %v410 = vpop.f32.mrf.mxu0
    %v411 = vadd.f32 %v116, %v410
    %412 = vmatmul.f32.gmra.mxu0 %v201
    %v413 = vpop.f32.mrf.mxu0
    %v414 = vadd.f32 %v116, %v413
    %415 = vmatmul.f32.gmra.mxu0 %v204
    %v416 = vpop.f32.mrf.mxu0
    %v417 = vadd.f32 %v116, %v416
    %418 = vmatmul.f32.gmra.mxu0 %v207
    %v419 = vpop.f32.mrf.mxu0
    %v420 = vadd.f32 %v116, %v419
    %421 = vmatmul.f32.gmra.mxu0 %v210
    %v422 = vpop.f32.mrf.mxu0
    %v423 = vadd.f32 %v116, %v422
    %424 = vmatmul.f32.gmra.mxu0 %v213
    %v425 = vpop.f32.mrf.mxu0
    %v426 = vadd.f32 %v116, %v425
    %427 = vmatmul.f32.gmra.mxu0 %v216
    %v428 = vpop.f32.mrf.mxu0
    %v429 = vadd.f32 %v116, %v428
    %430 = vmatmul.f32.gmra.mxu0 %v219
    %v431 = vpop.f32.mrf.mxu0
    %v432 = vadd.f32 %v116, %v431
    %433 = vmatmul.f32.gmra.mxu0 %v222
    %v434 = vpop.f32.mrf.mxu0
    %v435 = vadd.f32 %v116, %v434
    %436 = vmatmul.f32.gmra.mxu0 %v225
    %v437 = vpop.f32.mrf.mxu0
    %v438 = vadd.f32 %v116, %v437
    %439 = vmatmul.f32.gmra.mxu0 %v228
    %v440 = vpop.f32.mrf.mxu0
    %v441 = vadd.f32 %v116, %v440
    %442 = vmatmul.f32.gmra.mxu0 %v231
    %v443 = vpop.f32.mrf.mxu0
    %v444 = vadd.f32 %v116, %v443
    %445 = vmatmul.f32.gmra.mxu0 %v234
    %v446 = vpop.f32.mrf.mxu0
    %v447 = vadd.f32 %v116, %v446
    %448 = vmatmul.f32.gmra.mxu0 %v237
    %v449 = vpop.f32.mrf.mxu0
    %v450 = vadd.f32 %v116, %v449
    %451 = vmatmul.f32.gmra.mxu0 %v240
    %v452 = vpop.f32.mrf.mxu0
    %v453 = vadd.f32 %v116, %v452
    %454 = vmatmul.f32.gmra.mxu0 %v243
    %v455 = vpop.f32.mrf.mxu0
    %v456 = vadd.f32 %v116, %v455
    %457 = vmatmul.f32.gmra.mxu0 %v246
    %v458 = vpop.f32.mrf.mxu0
    %v459 = vadd.f32 %v116, %v458
    %460 = vmatmul.f32.gmra.mxu0 %v249
    %v461 = vpop.f32.mrf.mxu0
    %v462 = vadd.f32 %v116, %v461
    %463 = vmatmul.f32.gmra.mxu0 %v252
    %v464 = vpop.f32.mrf.mxu0
    %v465 = vadd.f32 %v116, %v464
    %466 = vmatmul.f32.gmra.mxu0 %v255
    %v467 = vpop.f32.mrf.mxu0
    %v468 = vadd.f32 %v116, %v467
    %469 = vmatmul.f32.gmra.mxu0 %v258
    %v470 = vpop.f32.mrf.mxu0
    %v471 = vadd.f32 %v116, %v470
    %472 = vmatmul.f32.gmra.mxu0 %v261
    %v473 = vpop.f32.mrf.mxu0
    %v474 = vadd.f32 %v116, %v473
    %475 = vmatmul.f32.gmra.mxu0 %v264
    %v476 = vpop.f32.mrf.mxu0
    %v477 = vadd.f32 %v116, %v476
    %478 = vmatmul.f32.gmra.mxu0 %v267
    %v479 = vpop.f32.mrf.mxu0
    %v480 = vadd.f32 %v116, %v479
    %481 = vmatmul.f32.gmra.mxu0 %v270
    %v482 = vpop.f32.mrf.mxu0
    %v483 = vadd.f32 %v116, %v482
    %484 = vmatmul.f32.gmra.mxu0 %v273
    %v485 = vpop.f32.mrf.mxu0
    %v486 = vadd.f32 %v116, %v485
    %487 = vmatmul.f32.gmra.mxu0 %v276
    %v488 = vpop.f32.mrf.mxu0
    %v489 = vadd.f32 %v116, %v488
    %490 = vmatmul.f32.gmra.mxu0 %v279
    %v491 = vpop.f32.mrf.mxu0
    %v492 = vadd.f32 %v116, %v491
    %493 = vmatmul.f32.gmra.mxu0 %v282
    %v494 = vpop.f32.mrf.mxu0
    %v495 = vadd.f32 %v116, %v494
    %496 = vmatmul.f32.gmra.mxu0 %v285
    %v497 = vpop.f32.mrf.mxu0
    %v498 = vadd.f32 %v116, %v497
    %499 = vmatmul.f32.gmra.mxu0 %v288
    %v500 = vpop.f32.mrf.mxu0
    %v501 = vadd.f32 %v116, %v500
    %502 = vmatmul.f32.gmra.mxu0 %v291
    %v503 = vpop.f32.mrf.mxu0
    %v504 = vadd.f32 %v116, %v503
    %505 = vmatmul.f32.gmra.mxu0 %v294
    %v506 = vpop.f32.mrf.mxu0
    %v507 = vadd.f32 %v116, %v506
    %508 = vmatmul.f32.gmra.mxu0 %v297
    %v509 = vpop.f32.mrf.mxu0
    %v510 = vadd.f32 %v116, %v509
    %511 = vmatmul.f32.gmra.mxu0 %v300
    %v512 = vpop.f32.mrf.mxu0
    %v513 = vadd.f32 %v116, %v512
    %514 = vmatmul.f32.gmra.mxu0 %v303
    %v515 = vpop.f32.mrf.mxu0
    %v516 = vadd.f32 %v116, %v515
    %517 = vmatmul.f32.gmra.mxu0 %v306
    %v518 = vpop.f32.mrf.mxu0
    %v519 = vadd.f32 %v116, %v518
    %520 = vmatmul.f32.gmra.mxu0 %v309
    %v521 = vpop.f32.mrf.mxu0
    %v522 = vadd.f32 %v116, %v521
    %523 = vdwg.mxu0
    %v524 = vmax.f32 %v333, 0.0
    %v525 = vmax.f32 %v336, 0.0
    %v526 = vmax.f32 %v339, 0.0
    %v527 = vmax.f32 %v342, 0.0
    %v528 = vmax.f32 %v345, 0.0
    %v529 = vmax.f32 %v348, 0.0
    %v530 = vmax.f32 %v351, 0.0
    %v531 = vmax.f32 %v354, 0.0
    %v532 = vmax.f32 %v357, 0.0
    %v533 = vmax.f32 %v360, 0.0
    %v534 = vmax.f32 %v363, 0.0
    %v535 = vmax.f32 %v366, 0.0
    %v536 = vmax.f32 %v369, 0.0
    %v537 = vmax.f32 %v372, 0.0
    %v538 = vmax.f32 %v375, 0.0
    %v539 = vmax.f32 %v378, 0.0
    %v540 = vmax.f32 %v381, 0.0
    %v541 = vmax.f32 %v384, 0.0
    %v542 = vmax.f32 %v387, 0.0
    %v543 = vmax.f32 %v390, 0.0
    %v544 = vmax.f32 %v393, 0.0
    %v545 = vmax.f32 %v396, 0.0
    %v546 = vmax.f32 %v399, 0.0
    %v547 = vmax.f32 %v402, 0.0
    %v548 = vmax.f32 %v405, 0.0
    %v549 = vmax.f32 %v408, 0.0
    %v550 = vmax.f32 %v411, 0.0
    %v551 = vmax.f32 %v414, 0.0
    %v552 = vmax.f32 %v417, 0.0
    %v553 = vmax.f32 %v420, 0.0
    %v554 = vmax.f32 %v423, 0.0
    %v555 = vmax.f32 %v426, 0.0
    %v556 = vmax.f32 %v429, 0.0
    %v557 = vmax.f32 %v432, 0.0
    %v558 = vmax.f32 %v435, 0.0
    %v559 = vmax.f32 %v438, 0.0
    %v560 = vmax.f32 %v441, 0.0
    %v561 = vmax.f32 %v444, 0.0
    %v562 = vmax.f32 %v447, 0.0
    %v563 = vmax.f32 %v450, 0.0
    %v564 = vmax.f32 %v453, 0.0
    %v565 = vmax.f32 %v456, 0.0
    %v566 = vmax.f32 %v459, 0.0
    %v567 = vmax.f32 %v462, 0.0
    %v568 = vmax.f32 %v465, 0.0
    %v569 = vmax.f32 %v468, 0.0
    %v570 = vmax.f32 %v471, 0.0
    %v571 = vmax.f32 %v474, 0.0
    %v572 = vmax.f32 %v477, 0.0
    %v573 = vmax.f32 %v480, 0.0
    %v574 = vmax.f32 %v483, 0.0
    %v575 = vmax.f32 %v486, 0.0
    %v576 = vmax.f32 %v489, 0.0
    %v577 = vmax.f32 %v492, 0.0
    %v578 = vmax.f32 %v495, 0.0
    %v579 = vmax.f32 %v498, 0.0
    %v580 = vmax.f32 %v501, 0.0
    %v581 = vmax.f32 %v504, 0.0
    %v582 = vmax.f32 %v507, 0.0
    %v583 = vmax.f32 %v510, 0.0
    %v584 = vmax.f32 %v513, 0.0
    %v585 = vmax.f32 %v516, 0.0
    %v586 = vmax.f32 %v519, 0.0
    %v587 = vmax.f32 %v522, 0.0
    %v588 = vadd.f32 %v524, %v525
    %v589 = vadd.f32 %v588, %v526
    %v590 = vadd.f32 %v589, %v527
    %v591 = vadd.f32 %v590, %v528
    %v592 = vadd.f32 %v591, %v529
    %v593 = vadd.f32 %v592, %v530
    %v594 = vadd.f32 %v593, %v531
    %v595 = vadd.f32 %v594, %v532
    %v596 = vadd.f32 %v595, %v533
    %v597 = vadd.f32 %v596, %v534
    %v598 = vadd.f32 %v597, %v535
    %v599 = vadd.f32 %v598, %v536
    %v600 = vadd.f32 %v599, %v537
    %v601 = vadd.f32 %v600, %v538
    %v602 = vadd.f32 %v601, %v539
    %v603 = vadd.f32 %v602, %v540
    %v604 = vadd.f32 %v603, %v541
    %v605 = vadd.f32 %v604, %v542
    %v606 = vadd.f32 %v605, %v543
    %v607 = vadd.f32 %v606, %v544
    %v608 = vadd.f32 %v607, %v545
    %v609 = vadd.f32 %v608, %v546
    %v610 = vadd.f32 %v609, %v547
    %v611 = vadd.f32 %v610, %v548
    %v612 = vadd.f32 %v611, %v549
    %v613 = vadd.f32 %v612, %v550
    %v614 = vadd.f32 %v613, %v551
    %v615 = vadd.f32 %v614, %v552
    %v616 = vadd.f32 %v615, %v553
    %v617 = vadd.f32 %v616, %v554
    %v618 = vadd.f32 %v617, %v555
    %v619 = vrot.slane %v618, 4
    %v620 = vadd.f32 %v618, %v619
    %v621 = vrot.slane %v620, 2
    %v622 = vadd.f32 %v620, %v621
    %v623 = vrot.slane %v622, 1
    %v624 = vadd.f32 %v622, %v623
    %v625 = vrcp.pop 256.0
    %v626 = vmul.f32 256.0, %v625
    %v627 = vsub.f32 1.0, %v626
    %v628 = vmul.f32 %v625, %v627
    %v629 = vadd.f32 %v625, %v628
    %vm630 = vweird.f32 %v625
    %v631 = vsel %vm630, %v625, %v629
    %v632 = vmul.f32 %v624, %v631
    %v633 = vadd.f32 %v556, %v557
    %v634 = vadd.f32 %v633, %v558
    %v635 = vadd.f32 %v634, %v559
    %v636 = vadd.f32 %v635, %v560
    %v637 = vadd.f32 %v636, %v561
    %v638 = vadd.f32 %v637, %v562
    %v639 = vadd.f32 %v638, %v563
    %v640 = vadd.f32 %v639, %v564
    %v641 = vadd.f32 %v640, %v565
    %v642 = vadd.f32 %v641, %v566
    %v643 = vadd.f32 %v642, %v567
    %v644 = vadd.f32 %v643, %v568
    %v645 = vadd.f32 %v644, %v569
    %v646 = vadd.f32 %v645, %v570
    %v647 = vadd.f32 %v646, %v571
    %v648 = vadd.f32 %v647, %v572
    %v649 = vadd.f32 %v648, %v573
    %v650 = vadd.f32 %v649, %v574
    %v651 = vadd.f32 %v650, %v575
    %v652 = vadd.f32 %v651, %v576
    %v653 = vadd.f32 %v652, %v577
    %v654 = vadd.f32 %v653, %v578
    %v655 = vadd.f32 %v654, %v579
    %v656 = vadd.f32 %v655, %v580
    %v657 = vadd.f32 %v656, %v581
    %v658 = vadd.f32 %v657, %v582
    %v659 = vadd.f32 %v658, %v583
    %v660 = vadd.f32 %v659, %v584
    %v661 = vadd.f32 %v660, %v585
    %v662 = vadd.f32 %v661, %v586
    %v663 = vadd.f32 %v662, %v587
    %v664 = vrot.slane %v663, 4
    %v665 = vadd.f32 %v663, %v664
    %v666 = vrot.slane %v665, 2
    %v667 = vadd.f32 %v665, %v666
    %v668 = vrot.slane %v667, 1
    %v669 = vadd.f32 %v667, %v668
    %v670 = vmul.f32 %v669, %v631
    %vm671 = vcmask 1040384
    %v672 = vsel %vm671, %v632, %v670
    %v673 = vld [vmem:[%s3] sm:$0xff]
    %v674 = vld [vmem:[%s3 + $0x8] sm:$0xff]
    %v675 = vld [vmem:[%s3 + $0x10] sm:$0xff]
    %v676 = vld [vmem:[%s3 + $0x18] sm:$0xff]
    %v677 = vld [vmem:[%s3 + $0x20] sm:$0xff]
    %v678 = vld [vmem:[%s3 + $0x28] sm:$0xff]
    %v679 = vld [vmem:[%s3 + $0x30] sm:$0xff]
    %v680 = vld [vmem:[%s3 + $0x38] sm:$0xff]
    %v681 = vld [vmem:[%s3 + $0x40] sm:$0xff]
    %v682 = vld [vmem:[%s3 + $0x48] sm:$0xff]
    %v683 = vld [vmem:[%s3 + $0x50] sm:$0xff]
    %v684 = vld [vmem:[%s3 + $0x58] sm:$0xff]
    %v685 = vld [vmem:[%s3 + $0x60] sm:$0xff]
    %v686 = vld [vmem:[%s3 + $0x68] sm:$0xff]
    %v687 = vld [vmem:[%s3 + $0x70] sm:$0xff]
    %v688 = vld [vmem:[%s3 + $0x78] sm:$0xff]
    %689 = vmatpush.msra.mxu0 %v688
    %690 = vmatpush.msra.mxu0 %v687
    %691 = vmatpush.msra.mxu0 %v686
    %692 = vmatpush.msra.mxu0 %v685
    %693 = vmatpush.msra.mxu0 %v684
    %694 = vmatpush.msra.mxu0 %v683
    %695 = vmatpush.msra.mxu0 %v682
    %696 = vmatpush.msra.mxu0 %v681
    %697 = vmatpush.msra.mxu0 %v680
    %698 = vmatpush.msra.mxu0 %v679
    %699 = vmatpush.msra.mxu0 %v678
    %700 = vmatpush.msra.mxu0 %v677
    %701 = vmatpush.msra.mxu0 %v676
    %702 = vmatpush.msra.mxu0 %v675
    %703 = vmatpush.msra.mxu0 %v674
    %704 = vmatpush.msra.mxu0 %v673
    %705 = vmatmul.f32.gmra.mxu0 %v672
    %v706 = vpop.f32.mrf.mxu0
    %v707 = vadd.f32 0.0, %v706
    %708 = vdwg.mxu0
    %vm709 = vcmask 1041408
    %v710 = vsel %vm709, %v707, 0.0
    %v711 = vrot.slane %v710, 4
    %v712 = vadd.f32 %v710, %v711
    %v713 = vrot.slane %v712, 2
    %v714 = vadd.f32 %v712, %v713
    %v715 = vrot.slane %v714, 1
    %v716 = vadd.f32 %v714, %v715
    %v717 = vrcp.pop 2.0
    %v718 = vmul.f32 2.0, %v717
    %v719 = vsub.f32 1.0, %v718
    %v720 = vmul.f32 %v717, %v719
    %v721 = vadd.f32 %v717, %v720
    %vm722 = vweird.f32 %v717
    %v723 = vsel %vm722, %v717, %v721
    %v724 = vmul.f32 %v716, %v723
    %v725 = vsub.f32 %v707, %v724
    %v726 = vmul.f32 %v725, %v725
    %v727 = vsel %vm709, %v726, 0.0
    %v728 = vrot.slane %v727, 4
    %v729 = vadd.f32 %v727, %v728
    %v730 = vrot.slane %v729, 2
    %v731 = vadd.f32 %v729, %v730
    %v732 = vrot.slane %v731, 1
    %v733 = vadd.f32 %v731, %v732
    %v734 = vmul.f32 %v733, %v723
    %v735 = vadd.f32 %v734, 1e-05
    %v736 = vrsqrt.pop %v735
    %v737 = vmul.f32 %v736, %v735
    %v738 = vmul.f32 %v737, %v736
    %v739 = vmul.f32 0.5, %v738
    %v740 = vsub.f32 1.5, %v739
    %v741 = vmul.f32 %v736, %v740
    %vm742 = vweird.f32 %v735
    %vm743 = vweird.f32 %v736
    %vm744 = vmor %vm742, %vm743
    %v745 = vsel %vm744, %v736, %v741
    %v746 = vmul.f32 %v725, %v745
    %v747 = vld [vmem:[%s4] sm:$0x1]
    %v749 = vperm.slane %v747, 0
    %v751 = vmul.f32 %v746, %v749
    %v752 = vld [vmem:[%s5] sm:$0x1]
    %v754 = vperm.slane %v752, 0
    %v756 = vadd.f32 %v751, %v754
    %v757 = vmax.f32 %v756, 0.0
    %v758 = vld [vmem:[%s6] sm:$0xff]
    %v759 = vld [vmem:[%s6 + $0x8] sm:$0xff]
    %v760 = vld [vmem:[%s6 + $0x10] sm:$0xff]
    %v761 = vld [vmem:[%s6 + $0x18] sm:$0xff]
    %v762 = vld [vmem:[%s6 + $0x20] sm:$0xff]
    %v763 = vld [vmem:[%s6 + $0x28] sm:$0xff]
    %v764 = vld [vmem:[%s6 + $0x30] sm:$0xff]
    %v765 = vld [vmem:[%s6 + $0x38] sm:$0xff]
    %v766 = vld [vmem:[%s6 + $0x40] sm:$0xff]
    %v767 = vld [vmem:[%s6 + $0x48] sm:$0xff]
    %v768 = vld [vmem:[%s6 + $0x50] sm:$0xff]
    %v769 = vld [vmem:[%s6 + $0x58] sm:$0xff]
    %v770 = vld [vmem:[%s6 + $0x60] sm:$0xff]
    %v771 = vld [vmem:[%s6 + $0x68] sm:$0xff]
    %v772 = vld [vmem:[%s6 + $0x70] sm:$0xff]
    %v773 = vld [vmem:[%s6 + $0x78] sm:$0xff]
    %v774 = vld [vmem:[%s7] sm:$0x1]
    %v776 = vperm.slane %v774, 0
    %778 = vmatpush.msra.mxu0 %v773
    %779 = vmatpush.msra.mxu0 %v772
    %780 = vmatpush.msra.mxu0 %v771
    %781 = vmatpush.msra.mxu0 %v770
    %782 = vmatpush.msra.mxu0 %v769
    %783 = vmatpush.msra.mxu0 %v768
    %784 = vmatpush.msra.mxu0 %v767
    %785 = vmatpush.msra.mxu0 %v766
    %786 = vmatpush.msra.mxu0 %v765
    %787 = vmatpush.msra.mxu0 %v764
    %788 = vmatpush.msra.mxu0 %v763
    %789 = vmatpush.msra.mxu0 %v762
    %790 = vmatpush.msra.mxu0 %v761
    %791 = vmatpush.msra.mxu0 %v760
    %792 = vmatpush.msra.mxu0 %v759
    %793 = vmatpush.msra.mxu0 %v758
    %794 = vmatmul.f32.gmra.mxu0 %v757
    %v795 = vpop.f32.mrf.mxu0
    %v796 = vadd.f32 %v776, %v795
    %797 = vdwg.mxu0
    %v798 = vld [vmem:[%s8] sm:$0xff]
    %v799 = vld [vmem:[%s8 + $0x8] sm:$0xff]
    %v800 = vld [vmem:[%s8 + $0x10] sm:$0xff]
    %v801 = vld [vmem:[%s8 + $0x18] sm:$0xff]
    %v802 = vld [vmem:[%s8 + $0x20] sm:$0xff]
    %v803 = vld [vmem:[%s8 + $0x28] sm:$0xff]
    %v804 = vld [vmem:[%s8 + $0x30] sm:$0xff]
    %v805 = vld [vmem:[%s8 + $0x38] sm:$0xff]
    %v806 = vld [vmem:[%s8 + $0x40] sm:$0xff]
    %v807 = vld [vmem:[%s8 + $0x48] sm:$0xff]
    %v808 = vld [vmem:[%s8 + $0x50] sm:$0xff]
    %v809 = vld [vmem:[%s8 + $0x58] sm:$0xff]
    %v810 = vld [vmem:[%s8 + $0x60] sm:$0xff]
    %v811 = vld [vmem:[%s8 + $0x68] sm:$0xff]
    %v812 = vld [vmem:[%s8 + $0x70] sm:$0xff]
    %v813 = vld [vmem:[%s8 + $0x78] sm:$0xff]
    %814 = vmatpush.msra.mxu0 %v813
    %815 = vmatpush.msra.mxu0 %v812
    %816 = vmatpush.msra.mxu0 %v811
    %817 = vmatpush.msra.mxu0 %v810
    %818 = vmatpush.msra.mxu0 %v809
    %819 = vmatpush.msra.mxu0 %v808
    %820 = vmatpush.msra.mxu0 %v807
    %821 = vmatpush.msra.mxu0 %v806
    %822 = vmatpush.msra.mxu0 %v805
    %823 = vmatpush.msra.mxu0 %v804
    %824 = vmatpush.msra.mxu0 %v803
    %825 = vmatpush.msra.mxu0 %v802
    %826 = vmatpush.msra.mxu0 %v801
    %827 = vmatpush.msra.mxu0 %v800
    %828 = vmatpush.msra.mxu0 %v799
    %829 = vmatpush.msra.mxu0 %v798
    %830 = vmatmul.f32.gmra.mxu0 %v796
    %v831 = vpop.f32.mrf.mxu0
    %v832 = vadd.f32 0.0, %v831
    %833 = vdwg.mxu0
    %v834 = vsel %vm709, %v832, 0.0
    %v835 = vrot.slane %v834, 4
    %v836 = vadd.f32 %v834, %v835
    %v837 = vrot.slane %v836, 2
    %v838 = vadd.f32 %v836, %v837
    %v839 = vrot.slane %v838, 1
    %v840 = vadd.f32 %v838, %v839
    %v841 = vmul.f32 %v840, %v723
    %v842 = vsub.f32 %v832, %v841
    %v843 = vmul.f32 %v842, %v842
    %v844 = vsel %vm709, %v843, 0.0
    %v845 = vrot.slane %v844, 4
    %v846 = vadd.f32 %v844, %v845
    %v847 = vrot.slane %v846, 2
    %v848 = vadd.f32 %v846, %v847
    %v849 = vrot.slane %v848, 1
    %v850 = vadd.f32 %v848, %v849
    %v851 = vmul.f32 %v850, %v723
    %v852 = vadd.f32 %v851, 1e-05
    %v853 = vrsqrt.pop %v852
    %v854 = vmul.f32 %v853, %v852
    %v855 = vmul.f32 %v854, %v853
    %v856 = vmul.f32 0.5, %v855
    %v857 = vsub.f32 1.5, %v856
    %v858 = vmul.f32 %v853, %v857
    %vm859 = vweird.f32 %v852
    %vm860 = vweird.f32 %v853
    %vm861 = vmor %vm859, %vm860
    %v862 = vsel %vm861, %v853, %v858
    %v863 = vmul.f32 %v842, %v862
    %v864 = vld [vmem:[%s9] sm:$0x1]
    %v866 = vperm.slane %v864, 0
    %v868 = vmul.f32 %v863, %v866
    %v869 = vld [vmem:[%s10] sm:$0x1]
    %v871 = vperm.slane %v869, 0
    %v873 = vadd.f32 %v868, %v871
    %v874 = vmax.f32 %v873, 0.0
    %v875 = vld [vmem:[%s11] sm:$0xff]
    %v876 = vld [vmem:[%s11 + $0x8] sm:$0xff]
    %v877 = vld [vmem:[%s11 + $0x10] sm:$0xff]
    %v878 = vld [vmem:[%s11 + $0x18] sm:$0xff]
    %v879 = vld [vmem:[%s11 + $0x20] sm:$0xff]
    %v880 = vld [vmem:[%s11 + $0x28] sm:$0xff]
    %v881 = vld [vmem:[%s11 + $0x30] sm:$0xff]
    %v882 = vld [vmem:[%s11 + $0x38] sm:$0xff]
    %v883 = vld [vmem:[%s11 + $0x40] sm:$0xff]
    %v884 = vld [vmem:[%s11 + $0x48] sm:$0xff]
    %v885 = vld [vmem:[%s11 + $0x50] sm:$0xff]
    %v886 = vld [vmem:[%s11 + $0x58] sm:$0xff]
    %v887 = vld [vmem:[%s11 + $0x60] sm:$0xff]
    %v888 = vld [vmem:[%s11 + $0x68] sm:$0xff]
    %v889 = vld [vmem:[%s11 + $0x70] sm:$0xff]
    %v890 = vld [vmem:[%s11 + $0x78] sm:$0xff]
    %v891 = vld [vmem:[%s12] sm:$0x1]
    %v893 = vperm.slane %v891, 0
    %895 = vmatpush.msra.mxu0 %v890
    %896 = vmatpush.msra.mxu0 %v889
    %897 = vmatpush.msra.mxu0 %v888
    %898 = vmatpush.msra.mxu0 %v887
    %899 = vmatpush.msra.mxu0 %v886
    %900 = vmatpush.msra.mxu0 %v885
    %901 = vmatpush.msra.mxu0 %v884
    %902 = vmatpush.msra.mxu0 %v883
    %903 = vmatpush.msra.mxu0 %v882
    %904 = vmatpush.msra.mxu0 %v881
    %905 = vmatpush.msra.mxu0 %v880
    %906 = vmatpush.msra.mxu0 %v879
    %907 = vmatpush.msra.mxu0 %v878
    %908 = vmatpush.msra.mxu0 %v877
    %909 = vmatpush.msra.mxu0 %v876
    %910 = vmatpush.msra.mxu0 %v875
    %911 = vmatmul.f32.gmra.mxu0 %v874
    %v912 = vpop.f32.mrf.mxu0
    %v913 = vadd.f32 %v893, %v912
    %914 = vdwg.mxu0
    %915 = vst [vmem:[#allocation2] sm:$0x3] %v913
    // Predicated region
    $region54: #{byol_forward.1} parent=1 // pred_check
      _
    $region55: #{byol_forward.1} parent=1 // pred_check_branch
      %917 = sbr.rel (0) target = $region57
    $region56: #{byol_forward.1} parent=1 // pred_region
      %919 = vsyncadd [#allocation3], 0
      %s921 = sshll.u32 [#allocation2], 4
      %s922 = int_to_ptr.vmem [resolvable:$true] %s921
      %s923 = sshll.u32 %s13, 4
      %s924 = int_to_ptr.hbm [resolvable:$true] %s923
      %926 = dma.vmem_to_hbm [thread:$0]  %s922, 32, %s924, [#allocation3]
    $region57: #{byol_forward.1} parent=1 // pred_fallthru
      _
    // Predicated region
    $region58: #{byol_forward.1} parent=1 // pred_check
      _
    $region59: #{byol_forward.1} parent=1 // pred_check_branch
      %928 = sbr.rel (0) target = $region61
    $region60: #{byol_forward.1} parent=1 // pred_region
      %930 = dma.done [#allocation3], 32
    $region61: #{byol_forward.1} parent=1 // pred_fallthru
      _
    %931 = vsyncpa [#allocation3], 1

</llo_original>
